<compile_context>
chip_gen: v6e
topology: v6e:2x2x1
jax: 0.10.0
libtpu: 0.0.40
codegen_flags: <defaults>
</compile_context>

<pallas_src>
import jax
import jax.numpy as jnp
from jax.experimental import pallas as pl
from jax.experimental.pallas import tpu as pltpu


def _round_up(x, m):
    return (x + m - 1) // m * m


def value_network_kernel(x_ref, w1_ref, b1_ref, w2_ref, b2_ref, w3_ref, b3_ref,
                         out_ref):
    # x_ref:  (K, Bt)    concatenated [state; action], feature-major
    # w1_ref: (32, K)    b1_ref: (32, 1)
    # w2_ref: (128, 32)  b2_ref: (128, 1)
    # w3_ref: (128, 1)   b3_ref: (1, 1)
    # out_ref:(1, Bt)    lane-dense output row
    x = x_ref[...]

    # layer 1: relu(W1 @ x + b1)                      -> (32, Bt)
    h1 = jnp.dot(w1_ref[...], x, preferred_element_type=jnp.float32) + b1_ref[...]
    h1 = jnp.maximum(h1, 0.0)

    # layer 2: relu(W2 @ h1 + b2)                     -> (128, Bt)
    h2 = jnp.dot(w2_ref[...], h1, preferred_element_type=jnp.float32) + b2_ref[...]
    h2 = jnp.maximum(h2, 0.0)

    # layer 3 (N == 1): VPU multiply + sublane reduction instead of an MXU
    # matmul that would use a single output lane.     -> (1, Bt)
    v = jnp.sum(h2 * w3_ref[...], axis=0, keepdims=True) + b3_ref[...]
    out_ref[...] = v.astype(out_ref.dtype)


def value_network_forward(state, action, params, *, block_b=1024):
    """state: (B, Ds) f32, action: (B, Da) f32 -> (B, 1) f32."""
    w1, b1, w2, b2, w3, b3 = params
    B = state.shape[0]
    K = state.shape[1] + action.shape[1]

    # Batch tile: multiple of 128 (lane width), capped by block_b.
    bt = min(_round_up(block_b, 128), _round_up(B, 128))
    B_pad = _round_up(B, bt)
    n_tiles = B_pad // bt

    # Wrapper-side layout plumbing: concat (emulates torch.cat) + transpose to
    # feature-major [K, B_pad] so the batch rides the lane axis; zero-pad the
    # ragged tail tile.
    x = jnp.concatenate([state, action], axis=1).astype(jnp.float32).T  # (K, B)
    if B_pad != B:
        x = jnp.pad(x, ((0, 0), (0, B_pad - B)))

    # Constant index_map => fetched once, VMEM-resident across all grid steps.
    resident = lambda shape: pl.BlockSpec(shape, lambda i: (0, 0))

    out = pl.pallas_call(
        value_network_kernel,
        out_shape=jax.ShapeDtypeStruct((1, B_pad), jnp.float32),
        grid=(n_tiles,),
        in_specs=[
            pl.BlockSpec((K, bt), lambda i: (0, i)),   # pipelined activation tile
            resident(w1.shape), resident(b1.shape),
            resident(w2.shape), resident(b2.shape),
            resident(w3.shape), resident(b3.shape),
        ],
        out_specs=pl.BlockSpec((1, bt), lambda i: (0, i)),
        compiler_params=pltpu.CompilerParams(
            dimension_semantics=("parallel",),        # megacore on v7x
            vmem_limit_bytes=32 * 1024 * 1024,        # v7x-safe budget
        ),
    )(x, w1, b1, w2, b2, w3, b3)

    # Back to the PyTorch-facing (B, 1) layout.
    return out[0, :B].reshape(B, 1)


def init_params(key, dim_state, dim_action, init_w=0.003):
    """Mirrors the PyTorch module's init. Weights in PyTorch [out, in] layout,
    biases as [out, 1] columns (feature-major, matching the kernel)."""
    ks = jax.random.split(key, 6)
    d_in1 = dim_state + dim_action

    bnd1 = 1.0 / jnp.sqrt(jnp.float32(d_in1))
    w1 = jax.random.uniform(ks[0], (32, d_in1), jnp.float32, -bnd1, bnd1)
    b1 = jax.random.uniform(ks[1], (32, 1), jnp.float32, -bnd1, bnd1)

    bnd2 = 1.0 / jnp.sqrt(jnp.float32(32.0))
    w2 = jax.random.uniform(ks[2], (128, 32), jnp.float32, -bnd2, bnd2)
    b2 = jax.random.uniform(ks[3], (128, 1), jnp.float32, -bnd2, bnd2)

    # linear3: uniform(-init_w, init_w); weight stored as a (128, 1) column
    # (transpose of PyTorch's (1, 128)).
    w3 = jax.random.uniform(ks[4], (128, 1), jnp.float32, -init_w, init_w)
    b3 = jax.random.uniform(ks[5], (1, 1), jnp.float32, -init_w, init_w)
    return (w1, b1, w2, b2, w3, b3)


def reference_forward(state, action, params):
    """Plain-JAX reference matching the PyTorch semantics."""
    w1, b1, w2, b2, w3, b3 = params
    x = jnp.concatenate([state, action], axis=1)
    h1 = jax.nn.relu(x @ w1.T + b1[:, 0])
    h2 = jax.nn.relu(h1 @ w2.T + b2[:, 0])
    return h2 @ w3 + b3[:, 0]


if __name__ == "__main__":
    # Pendulum-v1: dim_state = 3, dim_action = 1
    dim_state, dim_action = 3, 1

    key = jax.random.PRNGKey(0)
    k_s, k_a, k_p = jax.random.split(key, 3)
    params = init_params(k_p, dim_state, dim_action)

    # Small demo batch (single tile, padded 8 -> 128).
    batch = 8
    state = jax.random.normal(k_s, (batch, dim_state), jnp.float32)
    action = jax.random.uniform(k_a, (batch, dim_action), jnp.float32,
                                minval=-2.0, maxval=2.0)
    out = jax.block_until_ready(value_network_forward(state, action, params))
    ref = reference_forward(state, action, params)
    assert out.shape == (batch, 1)
    assert jnp.allclose(out, ref, atol=1e-4, rtol=1e-4), (out, ref)

    # Multi-tile / ragged-batch path (B=300, tile=128 -> grid of 3, padded tail).
    batch2 = 300
    state2 = jax.random.normal(k_s, (batch2, dim_state), jnp.float32)
    action2 = jax.random.uniform(k_a, (batch2, dim_action), jnp.float32,
                                 minval=-2.0, maxval=2.0)
    out2 = jax.block_until_ready(
        value_network_forward(state2, action2, params, block_b=128))
    ref2 = reference_forward(state2, action2, params)
    assert out2.shape == (batch2, 1)
    assert jnp.allclose(out2, ref2, atol=1e-4, rtol=1e-4), (out2, ref2)

    print("KERNEL_OK")
</pallas_src>

<mosaic_0001>
module attributes {stable_mosaic.version = 11 : i64} {
  func.func @value_network_kernel(%arg0: i32, %arg1: memref<4x128xf32, #tpu.memory_space<vmem>>, %arg2: memref<32x4xf32, #tpu.memory_space<vmem>>, %arg3: memref<32x1xf32, #tpu.memory_space<vmem>>, %arg4: memref<128x32xf32, #tpu.memory_space<vmem>>, %arg5: memref<128x1xf32, #tpu.memory_space<vmem>>, %arg6: memref<128x1xf32, #tpu.memory_space<vmem>>, %arg7: memref<1x1xf32, #tpu.memory_space<vmem>>, %arg8: memref<1x128xf32, #tpu.memory_space<vmem>>) attributes {dimension_semantics = [#tpu.dimension_semantics<parallel>], iteration_bounds = array<i64: 1>, scalar_prefetch = 0 : i64, scratch_operands = 0 : i64, tpu.core_type = #tpu.core_type<tc>, window_params = [{transform_indices = @transform_0, window_bounds = array<i64: 4, 128>}, {pipeline_mode = #tpu.pipeline_mode<synchronous>, transform_indices = @transform_1, window_bounds = array<i64: 32, 4>}, {pipeline_mode = #tpu.pipeline_mode<synchronous>, transform_indices = @transform_2, window_bounds = array<i64: 32, 1>}, {pipeline_mode = #tpu.pipeline_mode<synchronous>, transform_indices = @transform_3, window_bounds = array<i64: 128, 32>}, {pipeline_mode = #tpu.pipeline_mode<synchronous>, transform_indices = @transform_4, window_bounds = array<i64: 128, 1>}, {pipeline_mode = #tpu.pipeline_mode<synchronous>, transform_indices = @transform_5, window_bounds = array<i64: 128, 1>}, {pipeline_mode = #tpu.pipeline_mode<synchronous>, transform_indices = @transform_6, window_bounds = array<i64: 1, 1>}, {transform_indices = @transform_7, window_bounds = array<i64: 1, 128>}]} {
    %c0 = arith.constant 0 : index
    %c0_0 = arith.constant 0 : index
    %0 = vector.load %arg1[%c0, %c0_0] : memref<4x128xf32, #tpu.memory_space<vmem>>, vector<4x128xf32>
    %c0_1 = arith.constant 0 : index
    %c0_2 = arith.constant 0 : index
    %1 = vector.load %arg2[%c0_1, %c0_2] : memref<32x4xf32, #tpu.memory_space<vmem>>, vector<32x4xf32>
    %cst = arith.constant dense<0.000000e+00> : vector<32x128xf32>
    %2 = tpu.matmul %1, %0, %cst {dimension_numbers = #tpu.dot_dimension_numbers<[1], [0], [0], [1], [0, 0, 1, 1], [], []>} : vector<32x4xf32>, vector<4x128xf32>, vector<32x128xf32> -> vector<32x128xf32>
    %c0_3 = arith.constant 0 : index
    %c0_4 = arith.constant 0 : index
    %3 = vector.load %arg3[%c0_3, %c0_4] : memref<32x1xf32, #tpu.memory_space<vmem>>, vector<32x1xf32>
    %4 = vector.broadcast %3 : vector<32x1xf32> to vector<32x128xf32>
    %5 = arith.addf %2, %4 : vector<32x128xf32>
    %cst_5 = arith.constant 0.000000e+00 : f32
    %6 = vector.broadcast %cst_5 : f32 to vector<32x128xf32>
    %7 = arith.maximumf %5, %6 : vector<32x128xf32>
    %c0_6 = arith.constant 0 : index
    %c0_7 = arith.constant 0 : index
    %8 = vector.load %arg4[%c0_6, %c0_7] : memref<128x32xf32, #tpu.memory_space<vmem>>, vector<128x32xf32>
    %cst_8 = arith.constant dense<0.000000e+00> : vector<128x128xf32>
    %9 = tpu.matmul %8, %7, %cst_8 {dimension_numbers = #tpu.dot_dimension_numbers<[1], [0], [0], [1], [0, 0, 1, 1], [], []>} : vector<128x32xf32>, vector<32x128xf32>, vector<128x128xf32> -> vector<128x128xf32>
    %c0_9 = arith.constant 0 : index
    %c0_10 = arith.constant 0 : index
    %10 = vector.load %arg5[%c0_9, %c0_10] : memref<128x1xf32, #tpu.memory_space<vmem>>, vector<128x1xf32>
    %11 = vector.broadcast %10 : vector<128x1xf32> to vector<128x128xf32>
    %12 = arith.addf %9, %11 : vector<128x128xf32>
    %cst_11 = arith.constant 0.000000e+00 : f32
    %13 = vector.broadcast %cst_11 : f32 to vector<128x128xf32>
    %14 = arith.maximumf %12, %13 : vector<128x128xf32>
    %c0_12 = arith.constant 0 : index
    %c0_13 = arith.constant 0 : index
    %15 = vector.load %arg6[%c0_12, %c0_13] : memref<128x1xf32, #tpu.memory_space<vmem>>, vector<128x1xf32>
    %16 = vector.broadcast %15 : vector<128x1xf32> to vector<128x128xf32>
    %17 = arith.mulf %14, %16 : vector<128x128xf32>
    %cst_14 = arith.constant dense<0.000000e+00> : vector<128xf32>
    %18 = vector.multi_reduction <add>, %17, %cst_14 [0] : vector<128x128xf32> to vector<128xf32>
    %19 = vector.shape_cast %18 : vector<128xf32> to vector<1x128xf32>
    %c0_15 = arith.constant 0 : index
    %c0_16 = arith.constant 0 : index
    %20 = vector.load %arg7[%c0_15, %c0_16] : memref<1x1xf32, #tpu.memory_space<vmem>>, vector<1x1xf32>
    %21 = vector.broadcast %20 : vector<1x1xf32> to vector<1x128xf32>
    %22 = arith.addf %19, %21 : vector<1x128xf32>
    %c0_17 = arith.constant 0 : index
    %c0_18 = arith.constant 0 : index
    %23 = vector.load %arg8[%c0_17, %c0_18] : memref<1x128xf32, #tpu.memory_space<vmem>>, vector<1x128xf32>
    tpu.vector_store %arg8[%c0_17, %c0_18], %22 {strides = array<i32>} : memref<1x128xf32, #tpu.memory_space<vmem>>, vector<1x128xf32>,
    return
  }
  func.func @transform_0(%arg0: i32) -> (i32, i32) {
    %c0_i32 = arith.constant 0 : i32
    %c0_i32_0 = arith.constant 0 : i32
    return %c0_i32, %arg0 : i32, i32
  }
  func.func @transform_1(%arg0: i32) -> (i32, i32) {
    %c0_i32 = arith.constant 0 : i32
    %c0_i32_0 = arith.constant 0 : i32
    %c0_i32_1 = arith.constant 0 : i32
    return %c0_i32, %c0_i32_0 : i32, i32
  }
  func.func @transform_2(%arg0: i32) -> (i32, i32) {
    %c0_i32 = arith.constant 0 : i32
    %c0_i32_0 = arith.constant 0 : i32
    %c0_i32_1 = arith.constant 0 : i32
    return %c0_i32, %c0_i32_0 : i32, i32
  }
  func.func @transform_3(%arg0: i32) -> (i32, i32) {
    %c0_i32 = arith.constant 0 : i32
    %c0_i32_0 = arith.constant 0 : i32
    %c0_i32_1 = arith.constant 0 : i32
    return %c0_i32, %c0_i32_0 : i32, i32
  }
  func.func @transform_4(%arg0: i32) -> (i32, i32) {
    %c0_i32 = arith.constant 0 : i32
    %c0_i32_0 = arith.constant 0 : i32
    %c0_i32_1 = arith.constant 0 : i32
    return %c0_i32, %c0_i32_0 : i32, i32
  }
  func.func @transform_5(%arg0: i32) -> (i32, i32) {
    %c0_i32 = arith.constant 0 : i32
    %c0_i32_0 = arith.constant 0 : i32
    %c0_i32_1 = arith.constant 0 : i32
    return %c0_i32, %c0_i32_0 : i32, i32
  }
  func.func @transform_6(%arg0: i32) -> (i32, i32) {
    %c0_i32 = arith.constant 0 : i32
    %c0_i32_0 = arith.constant 0 : i32
    %c0_i32_1 = arith.constant 0 : i32
    return %c0_i32, %c0_i32_0 : i32, i32
  }
  func.func @transform_7(%arg0: i32) -> (i32, i32) {
    %c0_i32 = arith.constant 0 : i32
    %c0_i32_0 = arith.constant 0 : i32
    return %c0_i32, %arg0 : i32, i32
  }
}

</mosaic_0001>

<llo_original>
// kernel: tpu_custom_call.1
$region0: #{tpu_custom_call.1}
  #allocation0 [shape = 'u32[]', space=smem, size = 0x4, offset = 0x4, fixed_abs, tag = 'smem constant byte address 0x4 - core index']
  #allocation1 [shape = 'u32[144,128]{1,0:T(1,128)}', space=vmem, size = 0x12000, scoped, tag = 'internal scratch']
  #allocation2 [shape = 'f32[1,1]{1,0:T(1,128)S(1)}', space=vmem, size = 0x200, scoped, tag = 'scoped memory for tpu_custom_call.1']
  %s0 = inlined_call_operand.vmem [shape: f32[4,128], index: 0, kind: input, shape index: {}]
  %s1 = inlined_call_operand.vmem [shape: f32[32,4], index: 1, kind: input, shape index: {}]
  %s2 = inlined_call_operand.vmem [shape: f32[32,1], index: 2, kind: input, shape index: {}]
  %s3 = inlined_call_operand.vmem [shape: f32[128,32], index: 3, kind: input, shape index: {}]
  %s4 = inlined_call_operand.vmem [shape: f32[128,1], index: 4, kind: input, shape index: {}]
  %s5 = inlined_call_operand.vmem [shape: f32[128,1], index: 5, kind: input, shape index: {}]
  %s6 = inlined_call_operand.<no memory space> [shape: f32[1,1], index: 6, kind: input, shape index: {}]
  %s7 = inlined_call_operand.hbm [shape: f32[1,128], index: 7, kind: output, shape index: {}]
  %s8 = sld [smem:[#allocation0]]
  $region38: #{tpu_custom_call.1} parent=0
    _
  %s10 = ssub.s32 1, %s8
  %s11 = scalar_select 0, %s10, %s8
  %v12 = vstv %s6
  %13 = vst [vmem:[#allocation2] sm:$0x1] %v12
  $region1: #{tpu_custom_call.1} parent=0
    #allocation3 [shape = 'u8[512]{0}', space=vmem, size = 0x400, scoped, tag = 'output window, operand 0, single buffered']
    #allocation4 [shape = 's32[1]{0}', space=sflag, size = 0x4, scoped, tag = 'scoped memory for tpu_custom_call.1']
    %14 = vsyncpa [#allocation4], 0
    // Predicated region
    $region2: #{tpu_custom_call.1} parent=1 // pred_check
      _
    $region3: #{tpu_custom_call.1} parent=1 // pred_check_branch
      %16 = sbr.rel (0) target = $region5
    $region4: #{tpu_custom_call.1} parent=1 // pred_region
      _
    $region5: #{tpu_custom_call.1} parent=1 // pred_fallthru
      _
    // Predicated region
    $region6: #{tpu_custom_call.1} parent=1 // pred_check
      _
    $region7: #{tpu_custom_call.1} parent=1 // pred_check_branch
      %18 = sbr.rel (0) target = $region9
    $region8: #{tpu_custom_call.1} parent=1 // pred_region
      _
    $region9: #{tpu_custom_call.1} parent=1 // pred_fallthru
      _
    // Predicated region
    $region10: #{tpu_custom_call.1} parent=1 // pred_check
      _
    $region11: #{tpu_custom_call.1} parent=1 // pred_check_branch
      %20 = sbr.rel (0) target = $region13
    $region12: #{tpu_custom_call.1} parent=1 // pred_region
      _
    $region13: #{tpu_custom_call.1} parent=1 // pred_fallthru
      _
    // Predicated region
    $region14: #{tpu_custom_call.1} parent=1 // pred_check
      _
    $region15: #{tpu_custom_call.1} parent=1 // pred_check_branch
      %22 = sbr.rel (0) target = $region17
    $region16: #{tpu_custom_call.1} parent=1 // pred_region
      _
    $region17: #{tpu_custom_call.1} parent=1 // pred_fallthru
      _
    // Predicated region
    $region18: #{tpu_custom_call.1} parent=1 // pred_check
      _
    $region19: #{tpu_custom_call.1} parent=1 // pred_check_branch
      %24 = sbr.rel (0) target = $region21
    $region20: #{tpu_custom_call.1} parent=1 // pred_region
      _
    $region21: #{tpu_custom_call.1} parent=1 // pred_fallthru
      _
    // Predicated region
    $region22: #{tpu_custom_call.1} parent=1 // pred_check
      _
    $region23: #{tpu_custom_call.1} parent=1 // pred_check_branch
      %26 = sbr.rel (0) target = $region25
    $region24: #{tpu_custom_call.1} parent=1 // pred_region
      _
    $region25: #{tpu_custom_call.1} parent=1 // pred_fallthru
      _
    // Predicated region
    $region26: #{tpu_custom_call.1} parent=1 // pred_check
      _
    $region27: #{tpu_custom_call.1} parent=1 // pred_check_branch
      %28 = sbr.rel (0) target = $region29
    $region28: #{tpu_custom_call.1} parent=1 // pred_region
      _
    $region29: #{tpu_custom_call.1} parent=1 // pred_fallthru
      _
    %v29 = vld [vmem:[%s0] sm:$0xf]
    %v30 = vld [vmem:[%s1] sm:$0xff]
    %v31 = vld [vmem:[%s1 + $0x8] sm:$0xff]
    %v32 = vld [vmem:[%s1 + $0x10] sm:$0xff]
    %v33 = vld [vmem:[%s1 + $0x18] sm:$0xff]
    %v34 = vld [vmem:[%s2] sm:$0xff]
    %v35 = vld [vmem:[%s2 + $0x8] sm:$0xff]
    %v36 = vld [vmem:[%s2 + $0x10] sm:$0xff]
    %v37 = vld [vmem:[%s2 + $0x18] sm:$0xff]
    %39 = vset.pattern.permute.xlu0 0
    %40 = vperm.xlu0 %39, %v34
    %v41 = vpop.permute.xlu0 %40
    %44 = vset.pattern.permute.xlu0 0
    %45 = vperm.xlu0 %44, %v35
    %v46 = vpop.permute.xlu0 %45
    %49 = vset.pattern.permute.xlu0 0
    %50 = vperm.xlu0 %49, %v36
    %v51 = vpop.permute.xlu0 %50
    %54 = vset.pattern.permute.xlu0 0
    %55 = vperm.xlu0 %54, %v37
    %v56 = vpop.permute.xlu0 %55
    %vm58 = vcmask 31744
    %v60 = vsel %vm58, %v30, 0
    %v63 = vsel %vm58, %v31, 0
    %v66 = vsel %vm58, %v32, 0
    %v69 = vsel %vm58, %v33, 0
    %vm71 = vcmask 1043456
    %v73 = vsel %vm71, %v29, 0
    %75 = vmatprep.subr.mxu0 0.0
    %76 = vmatpush1.msra.mxu0 0.0
    %77 = vmatprep.subr.mxu0 0.0
    %78 = vmatpush1.msra.mxu0 0.0
    %79 = vmatprep.subr.mxu0 0.0
    %80 = vmatpush1.msra.mxu0 0.0
    %81 = vmatprep.subr.mxu0 0.0
    %82 = vmatpush1.msra.mxu0 0.0
    %83 = vmatprep.subr.mxu0 0.0
    %84 = vmatpush1.msra.mxu0 0.0
    %85 = vmatprep.subr.mxu0 0.0
    %86 = vmatpush1.msra.mxu0 0.0
    %87 = vmatprep.subr.mxu0 0.0
    %88 = vmatpush1.msra.mxu0 0.0
    %89 = vmatprep.subr.mxu0 0.0
    %90 = vmatpush1.msra.mxu0 0.0
    %91 = vmatprep.subr.mxu0 0.0
    %92 = vmatpush1.msra.mxu0 0.0
    %93 = vmatprep.subr.mxu0 0.0
    %94 = vmatpush1.msra.mxu0 0.0
    %95 = vmatprep.subr.mxu0 0.0
    %96 = vmatpush1.msra.mxu0 0.0
    %97 = vmatprep.subr.mxu0 0.0
    %98 = vmatpush1.msra.mxu0 0.0
    %99 = vmatprep.subr.mxu0 0.0
    %100 = vmatpush1.msra.mxu0 0.0
    %101 = vmatprep.subr.mxu0 0.0
    %102 = vmatpush1.msra.mxu0 0.0
    %103 = vmatprep.subr.mxu0 0.0
    %104 = vmatpush1.msra.mxu0 0.0
    %105 = vmatprep.subr.mxu0 0.0
    %106 = vmatpush1.msra.mxu0 %v73
    %107 = vmatprep.subr.mxu0 0.0
    %108 = vmatpush2.msra.mxu0 0.0
    %109 = vmatprep.subr.mxu0 0.0
    %110 = vmatpush2.msra.mxu0 0.0
    %111 = vmatprep.subr.mxu0 0.0
    %112 = vmatpush2.msra.mxu0 0.0
    %113 = vmatprep.subr.mxu0 0.0
    %114 = vmatpush2.msra.mxu0 0.0
    %115 = vmatprep.subr.mxu0 0.0
    %116 = vmatpush2.msra.mxu0 0.0
    %117 = vmatprep.subr.mxu0 0.0
    %118 = vmatpush2.msra.mxu0 0.0
    %119 = vmatprep.subr.mxu0 0.0
    %120 = vmatpush2.msra.mxu0 0.0
    %121 = vmatprep.subr.mxu0 0.0
    %122 = vmatpush2.msra.mxu0 0.0
    %123 = vmatprep.subr.mxu0 0.0
    %124 = vmatpush2.msra.mxu0 0.0
    %125 = vmatprep.subr.mxu0 0.0
    %126 = vmatpush2.msra.mxu0 0.0
    %127 = vmatprep.subr.mxu0 0.0
    %128 = vmatpush2.msra.mxu0 0.0
    %129 = vmatprep.subr.mxu0 0.0
    %130 = vmatpush2.msra.mxu0 0.0
    %131 = vmatprep.subr.mxu0 0.0
    %132 = vmatpush2.msra.mxu0 0.0
    %133 = vmatprep.subr.mxu0 0.0
    %134 = vmatpush2.msra.mxu0 0.0
    %135 = vmatprep.subr.mxu0 0.0
    %136 = vmatpush2.msra.mxu0 0.0
    %137 = vmatprep.subr.mxu0 0.0
    %138 = vmatpush2.msra.mxu0 0.0
    %139 = vmatprep.mubr.f32.mxu0 0.0
    %140 = vmatmul.mubr.f32.gmra.mxu0 %v60
    %v141 = vpop.f32.mrf.mxu0
    %v142 = vadd.f32 %v41, %v141
    %v143 = vpop.f32.mrf.mxu0
    %144 = vmatprep.mubr.f32.mxu0 0.0
    %145 = vmatmul.mubr.f32.gmra.mxu0 %v63
    %v146 = vpop.f32.mrf.mxu0
    %v147 = vadd.f32 %v46, %v146
    %v148 = vpop.f32.mrf.mxu0
    %149 = vmatprep.mubr.f32.mxu0 0.0
    %150 = vmatmul.mubr.f32.gmra.mxu0 %v66
    %v151 = vpop.f32.mrf.mxu0
    %v152 = vadd.f32 %v51, %v151
    %v153 = vpop.f32.mrf.mxu0
    %154 = vmatprep.mubr.f32.mxu0 0.0
    %155 = vmatmul.mubr.f32.gmra.mxu0 %v69
    %v156 = vpop.f32.mrf.mxu0
    %v157 = vadd.f32 %v56, %v156
    %v158 = vpop.f32.mrf.mxu0
    %159 = vdwg.mxu0
    %v160 = vmax.f32 %v142, 0.0
    %v161 = vmax.f32 %v147, 0.0
    %v162 = vmax.f32 %v152, 0.0
    %v163 = vmax.f32 %v157, 0.0
    %v164 = vld [vmem:[%s3] sm:$0xff]
    %v165 = vld [vmem:[%s3 + $0x8] sm:$0xff]
    %v166 = vld [vmem:[%s3 + $0x10] sm:$0xff]
    %v167 = vld [vmem:[%s3 + $0x18] sm:$0xff]
    %v168 = vld [vmem:[%s3 + $0x20] sm:$0xff]
    %v169 = vld [vmem:[%s3 + $0x28] sm:$0xff]
    %v170 = vld [vmem:[%s3 + $0x30] sm:$0xff]
    %v171 = vld [vmem:[%s3 + $0x38] sm:$0xff]
    %v172 = vld [vmem:[%s3 + $0x40] sm:$0xff]
    %v173 = vld [vmem:[%s3 + $0x48] sm:$0xff]
    %v174 = vld [vmem:[%s3 + $0x50] sm:$0xff]
    %v175 = vld [vmem:[%s3 + $0x58] sm:$0xff]
    %v176 = vld [vmem:[%s3 + $0x60] sm:$0xff]
    %v177 = vld [vmem:[%s3 + $0x68] sm:$0xff]
    %v178 = vld [vmem:[%s3 + $0x70] sm:$0xff]
    %v179 = vld [vmem:[%s3 + $0x78] sm:$0xff]
    %v180 = vld [vmem:[%s4] sm:$0xff]
    %v181 = vld [vmem:[%s4 + $0x8] sm:$0xff]
    %v182 = vld [vmem:[%s4 + $0x10] sm:$0xff]
    %v183 = vld [vmem:[%s4 + $0x18] sm:$0xff]
    %v184 = vld [vmem:[%s4 + $0x20] sm:$0xff]
    %v185 = vld [vmem:[%s4 + $0x28] sm:$0xff]
    %v186 = vld [vmem:[%s4 + $0x30] sm:$0xff]
    %v187 = vld [vmem:[%s4 + $0x38] sm:$0xff]
    %v188 = vld [vmem:[%s4 + $0x40] sm:$0xff]
    %v189 = vld [vmem:[%s4 + $0x48] sm:$0xff]
    %v190 = vld [vmem:[%s4 + $0x50] sm:$0xff]
    %v191 = vld [vmem:[%s4 + $0x58] sm:$0xff]
    %v192 = vld [vmem:[%s4 + $0x60] sm:$0xff]
    %v193 = vld [vmem:[%s4 + $0x68] sm:$0xff]
    %v194 = vld [vmem:[%s4 + $0x70] sm:$0xff]
    %v195 = vld [vmem:[%s4 + $0x78] sm:$0xff]
    %197 = vset.pattern.permute.xlu0 0
    %198 = vperm.xlu0 %197, %v180
    %v199 = vpop.permute.xlu0 %198
    %202 = vset.pattern.permute.xlu0 0
    %203 = vperm.xlu0 %202, %v181
    %v204 = vpop.permute.xlu0 %203
    %207 = vset.pattern.permute.xlu0 0
    %208 = vperm.xlu0 %207, %v182
    %v209 = vpop.permute.xlu0 %208
    %212 = vset.pattern.permute.xlu0 0
    %213 = vperm.xlu0 %212, %v183
    %v214 = vpop.permute.xlu0 %213
    %217 = vset.pattern.permute.xlu0 0
    %218 = vperm.xlu0 %217, %v184
    %v219 = vpop.permute.xlu0 %218
    %222 = vset.pattern.permute.xlu0 0
    %223 = vperm.xlu0 %222, %v185
    %v224 = vpop.permute.xlu0 %223
    %227 = vset.pattern.permute.xlu0 0
    %228 = vperm.xlu0 %227, %v186
    %v229 = vpop.permute.xlu0 %228
    %232 = vset.pattern.permute.xlu0 0
    %233 = vperm.xlu0 %232, %v187
    %v234 = vpop.permute.xlu0 %233
    %237 = vset.pattern.permute.xlu0 0
    %238 = vperm.xlu0 %237, %v188
    %v239 = vpop.permute.xlu0 %238
    %242 = vset.pattern.permute.xlu0 0
    %243 = vperm.xlu0 %242, %v189
    %v244 = vpop.permute.xlu0 %243
    %247 = vset.pattern.permute.xlu0 0
    %248 = vperm.xlu0 %247, %v190
    %v249 = vpop.permute.xlu0 %248
    %252 = vset.pattern.permute.xlu0 0
    %253 = vperm.xlu0 %252, %v191
    %v254 = vpop.permute.xlu0 %253
    %257 = vset.pattern.permute.xlu0 0
    %258 = vperm.xlu0 %257, %v192
    %v259 = vpop.permute.xlu0 %258
    %262 = vset.pattern.permute.xlu0 0
    %263 = vperm.xlu0 %262, %v193
    %v264 = vpop.permute.xlu0 %263
    %267 = vset.pattern.permute.xlu0 0
    %268 = vperm.xlu0 %267, %v194
    %v269 = vpop.permute.xlu0 %268
    %272 = vset.pattern.permute.xlu0 0
    %273 = vperm.xlu0 %272, %v195
    %v274 = vpop.permute.xlu0 %273
    %vm276 = vcmask 261120
    %v278 = vsel %vm276, %v164, 0
    %v281 = vsel %vm276, %v165, 0
    %v284 = vsel %vm276, %v166, 0
    %v287 = vsel %vm276, %v167, 0
    %v290 = vsel %vm276, %v168, 0
    %v293 = vsel %vm276, %v169, 0
    %v296 = vsel %vm276, %v170, 0
    %v299 = vsel %vm276, %v171, 0
    %v302 = vsel %vm276, %v172, 0
    %v305 = vsel %vm276, %v173, 0
    %v308 = vsel %vm276, %v174, 0
    %v311 = vsel %vm276, %v175, 0
    %v314 = vsel %vm276, %v176, 0
    %v317 = vsel %vm276, %v177, 0
    %v320 = vsel %vm276, %v178, 0
    %v323 = vsel %vm276, %v179, 0
    %325 = vmatprep.subr.mxu0 0.0
    %326 = vmatpush1.msra.mxu0 0.0
    %327 = vmatprep.subr.mxu0 0.0
    %328 = vmatpush1.msra.mxu0 0.0
    %329 = vmatprep.subr.mxu0 0.0
    %330 = vmatpush1.msra.mxu0 0.0
    %331 = vmatprep.subr.mxu0 0.0
    %332 = vmatpush1.msra.mxu0 0.0
    %333 = vmatprep.subr.mxu0 0.0
    %334 = vmatpush1.msra.mxu0 0.0
    %335 = vmatprep.subr.mxu0 0.0
    %336 = vmatpush1.msra.mxu0 0.0
    %337 = vmatprep.subr.mxu0 0.0
    %338 = vmatpush1.msra.mxu0 0.0
    %339 = vmatprep.subr.mxu0 0.0
    %340 = vmatpush1.msra.mxu0 0.0
    %341 = vmatprep.subr.mxu0 0.0
    %342 = vmatpush1.msra.mxu0 0.0
    %343 = vmatprep.subr.mxu0 0.0
    %344 = vmatpush1.msra.mxu0 0.0
    %345 = vmatprep.subr.mxu0 0.0
    %346 = vmatpush1.msra.mxu0 0.0
    %347 = vmatprep.subr.mxu0 0.0
    %348 = vmatpush1.msra.mxu0 0.0
    %349 = vmatprep.subr.mxu0 0.0
    %350 = vmatpush1.msra.mxu0 %v163
    %351 = vmatprep.subr.mxu0 0.0
    %352 = vmatpush1.msra.mxu0 %v162
    %353 = vmatprep.subr.mxu0 0.0
    %354 = vmatpush1.msra.mxu0 %v161
    %355 = vmatprep.subr.mxu0 0.0
    %356 = vmatpush1.msra.mxu0 %v160
    %357 = vmatprep.subr.mxu0 0.0
    %358 = vmatpush2.msra.mxu0 0.0
    %359 = vmatprep.subr.mxu0 0.0
    %360 = vmatpush2.msra.mxu0 0.0
    %361 = vmatprep.subr.mxu0 0.0
    %362 = vmatpush2.msra.mxu0 0.0
    %363 = vmatprep.subr.mxu0 0.0
    %364 = vmatpush2.msra.mxu0 0.0
    %365 = vmatprep.subr.mxu0 0.0
    %366 = vmatpush2.msra.mxu0 0.0
    %367 = vmatprep.subr.mxu0 0.0
    %368 = vmatpush2.msra.mxu0 0.0
    %369 = vmatprep.subr.mxu0 0.0
    %370 = vmatpush2.msra.mxu0 0.0
    %371 = vmatprep.subr.mxu0 0.0
    %372 = vmatpush2.msra.mxu0 0.0
    %373 = vmatprep.subr.mxu0 0.0
    %374 = vmatpush2.msra.mxu0 0.0
    %375 = vmatprep.subr.mxu0 0.0
    %376 = vmatpush2.msra.mxu0 0.0
    %377 = vmatprep.subr.mxu0 0.0
    %378 = vmatpush2.msra.mxu0 0.0
    %379 = vmatprep.subr.mxu0 0.0
    %380 = vmatpush2.msra.mxu0 0.0
    %381 = vmatprep.subr.mxu0 0.0
    %382 = vmatpush2.msra.mxu0 0.0
    %383 = vmatprep.subr.mxu0 0.0
    %384 = vmatpush2.msra.mxu0 0.0
    %385 = vmatprep.subr.mxu0 0.0
    %386 = vmatpush2.msra.mxu0 0.0
    %387 = vmatprep.subr.mxu0 0.0
    %388 = vmatpush2.msra.mxu0 0.0
    %389 = vmatprep.mubr.f32.mxu0 0.0
    %390 = vmatmul.mubr.f32.gmra.mxu0 %v278
    %v391 = vpop.f32.mrf.mxu0
    %v392 = vadd.f32 %v199, %v391
    %v393 = vpop.f32.mrf.mxu0
    %394 = vmatprep.mubr.f32.mxu0 0.0
    %395 = vmatmul.mubr.f32.gmra.mxu0 %v281
    %v396 = vpop.f32.mrf.mxu0
    %v397 = vadd.f32 %v204, %v396
    %v398 = vpop.f32.mrf.mxu0
    %399 = vmatprep.mubr.f32.mxu0 0.0
    %400 = vmatmul.mubr.f32.gmra.mxu0 %v284
    %v401 = vpop.f32.mrf.mxu0
    %v402 = vadd.f32 %v209, %v401
    %v403 = vpop.f32.mrf.mxu0
    %404 = vmatprep.mubr.f32.mxu0 0.0
    %405 = vmatmul.mubr.f32.gmra.mxu0 %v287
    %v406 = vpop.f32.mrf.mxu0
    %v407 = vadd.f32 %v214, %v406
    %v408 = vpop.f32.mrf.mxu0
    %409 = vmatprep.mubr.f32.mxu0 0.0
    %410 = vmatmul.mubr.f32.gmra.mxu0 %v290
    %v411 = vpop.f32.mrf.mxu0
    %v412 = vadd.f32 %v219, %v411
    %v413 = vpop.f32.mrf.mxu0
    %414 = vmatprep.mubr.f32.mxu0 0.0
    %415 = vmatmul.mubr.f32.gmra.mxu0 %v293
    %v416 = vpop.f32.mrf.mxu0
    %v417 = vadd.f32 %v224, %v416
    %v418 = vpop.f32.mrf.mxu0
    %419 = vmatprep.mubr.f32.mxu0 0.0
    %420 = vmatmul.mubr.f32.gmra.mxu0 %v296
    %v421 = vpop.f32.mrf.mxu0
    %v422 = vadd.f32 %v229, %v421
    %v423 = vpop.f32.mrf.mxu0
    %424 = vmatprep.mubr.f32.mxu0 0.0
    %425 = vmatmul.mubr.f32.gmra.mxu0 %v299
    %v426 = vpop.f32.mrf.mxu0
    %v427 = vadd.f32 %v234, %v426
    %v428 = vpop.f32.mrf.mxu0
    %429 = vmatprep.mubr.f32.mxu0 0.0
    %430 = vmatmul.mubr.f32.gmra.mxu0 %v302
    %v431 = vpop.f32.mrf.mxu0
    %v432 = vadd.f32 %v239, %v431
    %v433 = vpop.f32.mrf.mxu0
    %434 = vmatprep.mubr.f32.mxu0 0.0
    %435 = vmatmul.mubr.f32.gmra.mxu0 %v305
    %v436 = vpop.f32.mrf.mxu0
    %v437 = vadd.f32 %v244, %v436
    %v438 = vpop.f32.mrf.mxu0
    %439 = vmatprep.mubr.f32.mxu0 0.0
    %440 = vmatmul.mubr.f32.gmra.mxu0 %v308
    %v441 = vpop.f32.mrf.mxu0
    %v442 = vadd.f32 %v249, %v441
    %v443 = vpop.f32.mrf.mxu0
    %444 = vmatprep.mubr.f32.mxu0 0.0
    %445 = vmatmul.mubr.f32.gmra.mxu0 %v311
    %v446 = vpop.f32.mrf.mxu0
    %v447 = vadd.f32 %v254, %v446
    %v448 = vpop.f32.mrf.mxu0
    %449 = vmatprep.mubr.f32.mxu0 0.0
    %450 = vmatmul.mubr.f32.gmra.mxu0 %v314
    %v451 = vpop.f32.mrf.mxu0
    %v452 = vadd.f32 %v259, %v451
    %v453 = vpop.f32.mrf.mxu0
    %454 = vmatprep.mubr.f32.mxu0 0.0
    %455 = vmatmul.mubr.f32.gmra.mxu0 %v317
    %v456 = vpop.f32.mrf.mxu0
    %v457 = vadd.f32 %v264, %v456
    %v458 = vpop.f32.mrf.mxu0
    %459 = vmatprep.mubr.f32.mxu0 0.0
    %460 = vmatmul.mubr.f32.gmra.mxu0 %v320
    %v461 = vpop.f32.mrf.mxu0
    %v462 = vadd.f32 %v269, %v461
    %v463 = vpop.f32.mrf.mxu0
    %464 = vmatprep.mubr.f32.mxu0 0.0
    %465 = vmatmul.mubr.f32.gmra.mxu0 %v323
    %v466 = vpop.f32.mrf.mxu0
    %v467 = vadd.f32 %v274, %v466
    %v468 = vpop.f32.mrf.mxu0
    %469 = vdwg.mxu0
    %v470 = vmax.f32 %v392, 0.0
    %v471 = vmax.f32 %v397, 0.0
    %v472 = vmax.f32 %v402, 0.0
    %v473 = vmax.f32 %v407, 0.0
    %v474 = vmax.f32 %v412, 0.0
    %v475 = vmax.f32 %v417, 0.0
    %v476 = vmax.f32 %v422, 0.0
    %v477 = vmax.f32 %v427, 0.0
    %v478 = vmax.f32 %v432, 0.0
    %v479 = vmax.f32 %v437, 0.0
    %v480 = vmax.f32 %v442, 0.0
    %v481 = vmax.f32 %v447, 0.0
    %v482 = vmax.f32 %v452, 0.0
    %v483 = vmax.f32 %v457, 0.0
    %v484 = vmax.f32 %v462, 0.0
    %v485 = vmax.f32 %v467, 0.0
    %v486 = vld [vmem:[%s5] sm:$0xff]
    %v487 = vld [vmem:[%s5 + $0x8] sm:$0xff]
    %v488 = vld [vmem:[%s5 + $0x10] sm:$0xff]
    %v489 = vld [vmem:[%s5 + $0x18] sm:$0xff]
    %v490 = vld [vmem:[%s5 + $0x20] sm:$0xff]
    %v491 = vld [vmem:[%s5 + $0x28] sm:$0xff]
    %v492 = vld [vmem:[%s5 + $0x30] sm:$0xff]
    %v493 = vld [vmem:[%s5 + $0x38] sm:$0xff]
    %v494 = vld [vmem:[%s5 + $0x40] sm:$0xff]
    %v495 = vld [vmem:[%s5 + $0x48] sm:$0xff]
    %v496 = vld [vmem:[%s5 + $0x50] sm:$0xff]
    %v497 = vld [vmem:[%s5 + $0x58] sm:$0xff]
    %v498 = vld [vmem:[%s5 + $0x60] sm:$0xff]
    %v499 = vld [vmem:[%s5 + $0x68] sm:$0xff]
    %v500 = vld [vmem:[%s5 + $0x70] sm:$0xff]
    %v501 = vld [vmem:[%s5 + $0x78] sm:$0xff]
    %503 = vset.pattern.permute.xlu0 0
    %504 = vperm.xlu0 %503, %v486
    %v505 = vpop.permute.xlu0 %504
    %508 = vset.pattern.permute.xlu0 0
    %509 = vperm.xlu0 %508, %v487
    %v510 = vpop.permute.xlu0 %509
    %513 = vset.pattern.permute.xlu0 0
    %514 = vperm.xlu0 %513, %v488
    %v515 = vpop.permute.xlu0 %514
    %518 = vset.pattern.permute.xlu0 0
    %519 = vperm.xlu0 %518, %v489
    %v520 = vpop.permute.xlu0 %519
    %523 = vset.pattern.permute.xlu0 0
    %524 = vperm.xlu0 %523, %v490
    %v525 = vpop.permute.xlu0 %524
    %528 = vset.pattern.permute.xlu0 0
    %529 = vperm.xlu0 %528, %v491
    %v530 = vpop.permute.xlu0 %529
    %533 = vset.pattern.permute.xlu0 0
    %534 = vperm.xlu0 %533, %v492
    %v535 = vpop.permute.xlu0 %534
    %538 = vset.pattern.permute.xlu0 0
    %539 = vperm.xlu0 %538, %v493
    %v540 = vpop.permute.xlu0 %539
    %543 = vset.pattern.permute.xlu0 0
    %544 = vperm.xlu0 %543, %v494
    %v545 = vpop.permute.xlu0 %544
    %548 = vset.pattern.permute.xlu0 0
    %549 = vperm.xlu0 %548, %v495
    %v550 = vpop.permute.xlu0 %549
    %553 = vset.pattern.permute.xlu0 0
    %554 = vperm.xlu0 %553, %v496
    %v555 = vpop.permute.xlu0 %554
    %558 = vset.pattern.permute.xlu0 0
    %559 = vperm.xlu0 %558, %v497
    %v560 = vpop.permute.xlu0 %559
    %563 = vset.pattern.permute.xlu0 0
    %564 = vperm.xlu0 %563, %v498
    %v565 = vpop.permute.xlu0 %564
    %568 = vset.pattern.permute.xlu0 0
    %569 = vperm.xlu0 %568, %v499
    %v570 = vpop.permute.xlu0 %569
    %573 = vset.pattern.permute.xlu0 0
    %574 = vperm.xlu0 %573, %v500
    %v575 = vpop.permute.xlu0 %574
    %578 = vset.pattern.permute.xlu0 0
    %579 = vperm.xlu0 %578, %v501
    %v580 = vpop.permute.xlu0 %579
    %v582 = vmul.f32 %v470, %v505
    %v583 = vmul.f32 %v471, %v510
    %v584 = vmul.f32 %v472, %v515
    %v585 = vmul.f32 %v473, %v520
    %v586 = vmul.f32 %v474, %v525
    %v587 = vmul.f32 %v475, %v530
    %v588 = vmul.f32 %v476, %v535
    %v589 = vmul.f32 %v477, %v540
    %v590 = vmul.f32 %v478, %v545
    %v591 = vmul.f32 %v479, %v550
    %v592 = vmul.f32 %v480, %v555
    %v593 = vmul.f32 %v481, %v560
    %v594 = vmul.f32 %v482, %v565
    %v595 = vmul.f32 %v483, %v570
    %v596 = vmul.f32 %v484, %v575
    %v597 = vmul.f32 %v485, %v580
    %v598 = vadd.f32 %v582, %v583
    %v599 = vadd.f32 %v598, %v584
    %v600 = vadd.f32 %v599, %v585
    %v601 = vadd.f32 %v600, %v586
    %v602 = vadd.f32 %v601, %v587
    %v603 = vadd.f32 %v602, %v588
    %v604 = vadd.f32 %v603, %v589
    %v605 = vadd.f32 %v604, %v590
    %v606 = vadd.f32 %v605, %v591
    %v607 = vadd.f32 %v606, %v592
    %v608 = vadd.f32 %v607, %v593
    %v609 = vadd.f32 %v608, %v594
    %v610 = vadd.f32 %v609, %v595
    %v611 = vadd.f32 %v610, %v596
    %v612 = vadd.f32 %v611, %v597
    %v613 = vrot.slane %v612, 4
    %v614 = vadd.f32 %v612, %v613
    %v615 = vrot.slane %v614, 2
    %v616 = vadd.f32 %v614, %v615
    %v617 = vrot.slane %v616, 1
    %v618 = vadd.f32 %v616, %v617
    %v619 = vld [vmem:[#allocation2] sm:$0x1]
    %621 = vset.pattern.permute.xlu0 0
    %622 = vperm.xlu0 %621, %v619
    %v623 = vpop.permute.xlu0 %622
    %v625 = vlaneseq
    %v626 = vshrl.u32 %v625, 7
    %v627 = vsub.s32 0, %v626
    %v628 = vrot.slane %v623, %v627
    %v629 = vadd.f32 %v618, %v628
    %630 = vst [vmem:[#allocation3] sm:$0x1] %v629
    // Predicated region
    $region30: #{tpu_custom_call.1} parent=1 // pred_check
      _
    $region31: #{tpu_custom_call.1} parent=1 // pred_check_branch
      %632 = sbr.rel (0) target = $region33
    $region32: #{tpu_custom_call.1} parent=1 // pred_region
      %s634 = ssub.s32 16, 16
      %635 = vsyncadd [#allocation4], %s634
      %s637 = sshll.u32 [#allocation3], 4
      %s638 = int_to_ptr.vmem [resolvable:$true] %s637
      %640 = dma.vmem_to_hbm [thread:$0]  %s638, 16, %s7, [#allocation4]
    $region33: #{tpu_custom_call.1} parent=1 // pred_fallthru
      _
    // Predicated region
    $region34: #{tpu_custom_call.1} parent=1 // pred_check
      _
    $region35: #{tpu_custom_call.1} parent=1 // pred_check_branch
      %642 = sbr.rel (0) target = $region37
    $region36: #{tpu_custom_call.1} parent=1 // pred_region
      %643 = dma.done [#allocation4], 16
    $region37: #{tpu_custom_call.1} parent=1 // pred_fallthru
      _
    %644 = vsyncpa [#allocation4], 1

</llo_original>
